<compile_context>
chip_gen: v7x
topology: tpu7x:2x2x1
jax: 0.10.0
libtpu: 0.0.40
codegen_flags: <defaults>
</compile_context>

<pallas_src>
import functools

import jax
import jax.numpy as jnp
from jax.experimental import pallas as pl
from jax.experimental.pallas import tpu as pltpu


def _round_up(x: int, m: int) -> int:
    return ((x + m - 1) // m) * m


# ---------------------------------------------------------------------------
# Pallas kernel: fused diffeq forward + analytic Hutchinson divergence
# ---------------------------------------------------------------------------
def _cnf_odefunc_kernel(t_ref, y_ref, e_ref,
                        w1_ref, b1_ref, wt_ref, w2_ref, w2t_ref, b2_ref,
                        dy_ref, ndiv_ref):
    t = t_ref[0, 0]                              # scalar time from SMEM
    mxu_dt = w1_ref.dtype

    # y streams in its native dtype (normally f32 from the integrator) and is
    # cast to the MXU dtype on the VPU here -> no extra wrapper HBM pass.
    y = y_ref[...].astype(mxu_dt)                # (TB, D)
    e = e_ref[...]                               # (TB, D), already mxu dtype

    w1 = w1_ref[...]                             # (D, H), VMEM resident
    bias = b1_ref[...] + t * wt_ref[...]         # (1, H) f32, hoisted once

    # ---- forward: pre = y@W1 + b1 + t*wt ; h = tanh(pre) ; dy = h@W2 + b2 ----
    pre = jnp.dot(y, w1, preferred_element_type=jnp.float32) + bias        # (TB, H) f32
    h = jnp.tanh(pre)                                                      # f32 (EUP)
    dy = jnp.dot(h.astype(mxu_dt), w2_ref[...],
                 preferred_element_type=jnp.float32) + b2_ref[...]         # (TB, D) f32
    dy_ref[...] = dy.astype(dy_ref.dtype)

    # ---- Hutchinson trace, algebraically rewritten (no W1^T, no (B,D) temp):
    #   e . J . e = sum_h [ (e@W2^T) * (1 - h^2) ]_h * (e@W1)_h
    e_w1 = jnp.dot(e, w1, preferred_element_type=jnp.float32)              # (TB, H)
    grad_h = jnp.dot(e, w2t_ref[...], preferred_element_type=jnp.float32)  # (TB, H)
    grad_pre = grad_h * (1.0 - h * h)
    # Negation folded into the kernel: the module returns -divergence.
    ndiv_ref[...] = (-jnp.sum(grad_pre * e_w1, axis=1,
                              keepdims=True)).astype(ndiv_ref.dtype)


# ---------------------------------------------------------------------------
# Batch tiling / VMEM budgeting helpers (all Python-side, shape-static)
# ---------------------------------------------------------------------------
def _vmem_estimate_bytes(tb, d, h, y_bytes, mxu_bytes):
    # double-buffered streamed blocks + (conservatively double-buffered) weights
    # + f32 in-kernel temporaries.
    stream = 2 * (tb * d * y_bytes + tb * d * mxu_bytes + tb * d * 4 + tb * 4)
    weights = 2 * (3 * d * h * mxu_bytes + (2 * h + d) * 4)
    temps = 4 * tb * h * 4 + 2 * tb * d * 4
    return stream + weights + temps


def _choose_batch_tiling(B, d, h, y_bytes, mxu_bytes):
    """Return (TB, B_pad) with TB | B_pad. Avoids batch padding when possible."""
    vmem_cap = 40 * 1024 * 1024   # stay well under v7x's 64 MiB physical VMEM

    def fits(tb):
        return _vmem_estimate_bytes(tb, d, h, y_bytes, mxu_bytes) <= vmem_cap

    if B <= 256:
        # Small batch: split into two equal tiles when cleanly possible so the
        # "parallel" grid axis can shard across v7x's two TensorCores;
        # otherwise a single full-array block (full-dim blocks are legal, so
        # no padding is needed at all).
        if B >= 32 and B % 2 == 0 and (B // 2) % 16 == 0 and fits(B // 2):
            return B // 2, B
        return B, B
    # Large batch: prefer a tile that divides B exactly (no pad, no out slice).
    for tb in (512, 256, 128, 64):
        if B % tb == 0 and fits(tb):
            return tb, B
    # Otherwise minimise padded rows (pure HBM waste in a mem-bound kernel).
    best = None
    for tb in (128, 256, 512):
        if not fits(tb):
            continue
        key = (_round_up(B, tb) - B, -tb)
        if best is None or key < best[0]:
            best = (key, tb)
    tb = best[1] if best is not None else 64
    return tb, _round_up(B, tb)


# ---------------------------------------------------------------------------
# Jitted host wrapper
# ---------------------------------------------------------------------------
@functools.partial(jax.jit, static_argnames=("tb",))
def _cnf_forward(t, y, e_p, w1, b1, wt, w2, w2t, b2, *, tb):
    B, D = y.shape
    B_pad = e_p.shape[0]
    H = w1.shape[1]
    mxu_dtype = w1.dtype

    # Only pad the batch when TB does not divide B (the tiling chooser avoids
    # this whenever it can); fuse the bf16 cast into that single pad pass.
    if B_pad != B:
        y_in = jnp.pad(y.astype(mxu_dtype), ((0, B_pad - B), (0, 0)))
    else:
        y_in = y

    t_arr = jnp.reshape(t.astype(jnp.float32), (1, 1))
    grid = (B_pad // tb,)

    cost = pl.CostEstimate(
        flops=8 * B_pad * D * H,
        transcendentals=B_pad * H,
        bytes_accessed=int(
            B_pad * D * (y_in.dtype.itemsize + e_p.dtype.itemsize)   # y, e in
            + B_pad * D * 4 + B_pad * 4                              # dy, -div out
            + 3 * D * H * w1.dtype.itemsize + (2 * H + D) * 4),      # weights/biases
    )

    vmem_limit = int(min(64 * 1024 * 1024,
                         max(32 * 1024 * 1024,
                             2 * _vmem_estimate_bytes(tb, D, H,
                                                      y_in.dtype.itemsize,
                                                      e_p.dtype.itemsize))))

    dy_p, ndiv_p = pl.pallas_call(
        _cnf_odefunc_kernel,
        out_shape=(
            jax.ShapeDtypeStruct((B_pad, D), jnp.float32),
            jax.ShapeDtypeStruct((B_pad, 1), jnp.float32),
        ),
        grid=grid,
        in_specs=[
            pl.BlockSpec(memory_space=pltpu.SMEM),          # t  (scalar path)
            pl.BlockSpec((tb, D), lambda i: (i, 0)),        # y  (streamed)
            pl.BlockSpec((tb, D), lambda i: (i, 0)),        # e  (streamed, mxu dtype)
            pl.BlockSpec((D, H), lambda i: (0, 0)),         # W1   (VMEM resident)
            pl.BlockSpec((1, H), lambda i: (0, 0)),         # b1
            pl.BlockSpec((1, H), lambda i: (0, 0)),         # wt
            pl.BlockSpec((H, D), lambda i: (0, 0)),         # W2
            pl.BlockSpec((D, H), lambda i: (0, 0)),         # W2^T (pre-transposed)
            pl.BlockSpec((1, D), lambda i: (0, 0)),         # b2
        ],
        out_specs=(
            pl.BlockSpec((tb, D), lambda i: (i, 0)),        # dy
            pl.BlockSpec((tb, 1), lambda i: (i, 0)),        # -div
        ),
        compiler_params=pltpu.CompilerParams(
            dimension_semantics=("parallel",),
            vmem_limit_bytes=vmem_limit,
        ),
        cost_estimate=cost,
    )(t_arr, y_in, e_p, w1, b1, wt, w2, w2t, b2)

    if B_pad != B:
        return dy_p[:B], ndiv_p[:B]
    return dy_p, ndiv_p


# ---------------------------------------------------------------------------
# Wrapper mirroring CNFODEfunc.forward(t, states)
# ---------------------------------------------------------------------------
class CNFODEfuncPallas:
    def __init__(self, dim, hidden, key, rademacher=False, residual=False,
                 mxu_dtype=jnp.bfloat16):
        # TODO(synk): residual correction term of the reference is not implemented.
        assert not residual
        self.dim = dim
        self.hidden = hidden
        self.rademacher = rademacher
        self.mxu_dtype = jnp.dtype(mxu_dtype)   # bf16 default; f32 for exact math
        self._e = None
        self._e_prepared = None
        self._num_evals = 0                     # Python-side; not tracked under jit/scan

        k1, k2, k3, k4, k5 = jax.random.split(key, 5)
        s1 = 1.0 / jnp.sqrt(dim)
        s2 = 1.0 / jnp.sqrt(hidden)
        # Unpadded f32 master weights (also used by the pure-JAX references).
        self.w1 = (jax.random.normal(k1, (dim, hidden)) * s1).astype(jnp.float32)
        self.b1 = (jax.random.normal(k2, (1, hidden)) * 0.01).astype(jnp.float32)
        self.wt = (jax.random.normal(k3, (1, hidden)) * 0.01).astype(jnp.float32)
        self.w2 = (jax.random.normal(k4, (hidden, dim)) * s2).astype(jnp.float32)
        self.b2 = (jax.random.normal(k5, (1, dim)) * 0.01).astype(jnp.float32)

        # MXU-operand copies, built once: mxu dtype, W2 pre-transposed.
        md = self.mxu_dtype
        self.w1m = self.w1.astype(md)
        self.w2m = self.w2.astype(md)
        self.w2tm = jnp.asarray(self.w2.T).astype(md)

    def before_odeint(self, e=None):
        self._e = e
        self._e_prepared = None
        self._num_evals = 0

    def num_evals(self):
        return self._num_evals

    def _sample_e_like(self, y, key):
        if self.rademacher:
            return jax.random.randint(key, y.shape, 0, 2).astype(y.dtype) * 2 - 1
        return jax.random.normal(key, y.shape, dtype=y.dtype)

    def forward(self, t, states, key=None):
        assert len(states) >= 2
        y = states[0]
        self._num_evals += 1
        B = y.shape[0]

        if self._e is None:
            # effective_shape == D (int case): noise over the full feature dim.
            if key is None:
                key = jax.random.PRNGKey(1)
            self._e = self._sample_e_like(y, key)

        tb, b_pad = _choose_batch_tiling(B, self.dim, self.hidden,
                                         y.dtype.itemsize, self.mxu_dtype.itemsize)

        # e is constant across all evals of one odeint: cast to the MXU dtype
        # (and batch-pad if needed) ONCE instead of on every ODE evaluation.
        if self._e_prepared is None or self._e_prepared.shape[0] != b_pad:
            e_p = self._e.astype(self.mxu_dtype)
            if b_pad != B:
                e_p = jnp.pad(e_p, ((0, b_pad - B), (0, 0)))
            self._e_prepared = e_p

        dy, neg_div = _cnf_forward(
            jnp.asarray(t, dtype=jnp.float32), y, self._e_prepared,
            self.w1m, self.b1, self.wt, self.w2m, self.w2tm, self.b2, tb=tb)

        # TODO(synk): brute-force divergence branch (eval-time, flattened dim==2,
        # divergence_bf_aug) not reproduced; only the Hutchinson path is implemented.
        return tuple([dy, neg_div] + [jnp.zeros_like(s_) for s_ in states[2:]])


# ---------------------------------------------------------------------------
# Pure-JAX references for correctness checks
# ---------------------------------------------------------------------------
def _reference_f32(t, y, e, m):
    def f(y_):
        pre = y_ @ m.w1 + m.b1 + t * m.wt
        return jnp.tanh(pre) @ m.w2 + m.b2

    dy, vjp_fn = jax.vjp(f, y)
    (e_dzdx,) = vjp_fn(e)
    div = jnp.sum(e_dzdx * e, axis=1, keepdims=True)
    return dy, -div


def _reference_bf16(t, y, e, m):
    # Mirrors the kernel's bf16-operand / f32-accumulate recipe analytically.
    yb, eb = y.astype(jnp.bfloat16), e.astype(jnp.bfloat16)
    w1b, w2b = m.w1.astype(jnp.bfloat16), m.w2.astype(jnp.bfloat16)
    pre = jnp.dot(yb, w1b, preferred_element_type=jnp.float32) + m.b1 + t * m.wt
    h = jnp.tanh(pre)
    dy = jnp.dot(h.astype(jnp.bfloat16), w2b,
                 preferred_element_type=jnp.float32) + m.b2
    grad_h = jnp.dot(eb, w2b.T, preferred_element_type=jnp.float32)
    e_w1 = jnp.dot(eb, w1b, preferred_element_type=jnp.float32)
    div = jnp.sum(grad_h * (1.0 - h * h) * e_w1, axis=1, keepdims=True)
    return dy, -div


if __name__ == "__main__":
    key = jax.random.PRNGKey(0)
    k_param, k_y, k_e, k_y2, k_e2 = jax.random.split(key, 5)

    B, D, H = 8, 32, 64
    y = jax.random.normal(k_y, (B, D), dtype=jnp.float32)
    logp = jnp.zeros((B, 1), dtype=jnp.float32)
    e = jax.random.normal(k_e, (B, D), dtype=jnp.float32)
    t = 0.5

    # --- exact f32 MXU path: faithful to the PyTorch autograd spec ---
    model = CNFODEfuncPallas(dim=D, hidden=H, key=k_param, mxu_dtype=jnp.float32)
    model.before_odeint(e=e)
    out = model.forward(t, (y, logp))
    dy, neg_div = out[0], out[1]
    jax.block_until_ready((dy, neg_div))
    dy_ref, neg_div_ref = _reference_f32(jnp.float32(t), y, e, model)
    assert dy.shape == (B, D) and neg_div.shape == (B, 1)
    assert jnp.allclose(dy, dy_ref, atol=1e-3, rtol=1e-3), "f32 dy mismatch"
    assert jnp.allclose(neg_div, neg_div_ref, atol=1e-3, rtol=1e-3), "f32 div mismatch"

    # --- default path: bf16 MXU operands, f32 accumulation/elementwise ---
    model16 = CNFODEfuncPallas(dim=D, hidden=H, key=k_param)   # bf16 default
    model16.before_odeint(e=e)
    out16 = model16.forward(t, (y, logp))
    dy16, neg_div16 = out16[0], out16[1]
    jax.block_until_ready((dy16, neg_div16))
    dy_ref16, neg_div_ref16 = _reference_bf16(jnp.float32(t), y, e, model16)
    assert jnp.allclose(dy16, dy_ref16, atol=1e-2, rtol=1e-2), "bf16 dy mismatch"
    assert jnp.allclose(neg_div16, neg_div_ref16, atol=1e-2, rtol=1e-2), "bf16 div mismatch"

    # --- multi-step batch grid (grid=(2,), exercises the parallel axis) ---
    B2 = 32
    y2 = jax.random.normal(k_y2, (B2, D), dtype=jnp.float32)
    e2 = jax.random.normal(k_e2, (B2, D), dtype=jnp.float32)
    logp2 = jnp.zeros((B2, 1), dtype=jnp.float32)
    model16.before_odeint(e=e2)
    out2 = model16.forward(t, (y2, logp2))
    dy2, neg_div2 = out2[0], out2[1]
    jax.block_until_ready((dy2, neg_div2))
    dy_ref2, neg_div_ref2 = _reference_bf16(jnp.float32(t), y2, e2, model16)
    assert dy2.shape == (B2, D) and neg_div2.shape == (B2, 1)
    assert jnp.allclose(dy2, dy_ref2, atol=1e-2, rtol=1e-2), "grid dy mismatch"
    assert jnp.allclose(neg_div2, neg_div_ref2, atol=1e-2, rtol=1e-2), "grid div mismatch"

    print("KERNEL_OK")
</pallas_src>

<mosaic_0001>
module attributes {stable_mosaic.version = 11 : i64} {
  func.func @_cnf_odefunc_kernel(%arg0: i32, %arg1: memref<1x1xf32, #tpu.memory_space<smem>>, %arg2: memref<8x32xf32, #tpu.memory_space<vmem>>, %arg3: memref<8x32xf32, #tpu.memory_space<vmem>>, %arg4: memref<32x64xf32, #tpu.memory_space<vmem>>, %arg5: memref<1x64xf32, #tpu.memory_space<vmem>>, %arg6: memref<1x64xf32, #tpu.memory_space<vmem>>, %arg7: memref<64x32xf32, #tpu.memory_space<vmem>>, %arg8: memref<32x64xf32, #tpu.memory_space<vmem>>, %arg9: memref<1x32xf32, #tpu.memory_space<vmem>>, %arg10: memref<8x32xf32, #tpu.memory_space<vmem>>, %arg11: memref<8x1xf32, #tpu.memory_space<vmem>>) attributes {dimension_semantics = [#tpu.dimension_semantics<parallel>], iteration_bounds = array<i64: 1>, scalar_prefetch = 0 : i64, scratch_operands = 0 : i64, tpu.core_type = #tpu.core_type<tc>, window_params = [{transform_indices = @transform_0, window_bounds = array<i64: 1, 1>}, {transform_indices = @transform_1, window_bounds = array<i64: 8, 32>}, {transform_indices = @transform_2, window_bounds = array<i64: 8, 32>}, {pipeline_mode = #tpu.pipeline_mode<synchronous>, transform_indices = @transform_3, window_bounds = array<i64: 32, 64>}, {pipeline_mode = #tpu.pipeline_mode<synchronous>, transform_indices = @transform_4, window_bounds = array<i64: 1, 64>}, {pipeline_mode = #tpu.pipeline_mode<synchronous>, transform_indices = @transform_5, window_bounds = array<i64: 1, 64>}, {pipeline_mode = #tpu.pipeline_mode<synchronous>, transform_indices = @transform_6, window_bounds = array<i64: 64, 32>}, {pipeline_mode = #tpu.pipeline_mode<synchronous>, transform_indices = @transform_7, window_bounds = array<i64: 32, 64>}, {pipeline_mode = #tpu.pipeline_mode<synchronous>, transform_indices = @transform_8, window_bounds = array<i64: 1, 32>}, {transform_indices = @transform_9, window_bounds = array<i64: 8, 32>}, {transform_indices = @transform_10, window_bounds = array<i64: 8, 1>}]} {
    %c0 = arith.constant 0 : index
    %c0_0 = arith.constant 0 : index
    %0 = memref.load %arg1[%c0, %c0_0] : memref<1x1xf32, #tpu.memory_space<smem>>
    %c0_1 = arith.constant 0 : index
    %c0_2 = arith.constant 0 : index
    %1 = vector.load %arg2[%c0_1, %c0_2] : memref<8x32xf32, #tpu.memory_space<vmem>>, vector<8x32xf32>
    %c0_3 = arith.constant 0 : index
    %c0_4 = arith.constant 0 : index
    %2 = vector.load %arg3[%c0_3, %c0_4] : memref<8x32xf32, #tpu.memory_space<vmem>>, vector<8x32xf32>
    %c0_5 = arith.constant 0 : index
    %c0_6 = arith.constant 0 : index
    %3 = vector.load %arg4[%c0_5, %c0_6] : memref<32x64xf32, #tpu.memory_space<vmem>>, vector<32x64xf32>
    %c0_7 = arith.constant 0 : index
    %c0_8 = arith.constant 0 : index
    %4 = vector.load %arg5[%c0_7, %c0_8] : memref<1x64xf32, #tpu.memory_space<vmem>>, vector<1x64xf32>
    %c0_9 = arith.constant 0 : index
    %c0_10 = arith.constant 0 : index
    %5 = vector.load %arg6[%c0_9, %c0_10] : memref<1x64xf32, #tpu.memory_space<vmem>>, vector<1x64xf32>
    %6 = vector.broadcast %0 : f32 to vector<1x64xf32>
    %7 = arith.mulf %6, %5 : vector<1x64xf32>
    %8 = arith.addf %4, %7 : vector<1x64xf32>
    %cst = arith.constant dense<0.000000e+00> : vector<8x64xf32>
    %9 = tpu.matmul %1, %3, %cst {dimension_numbers = #tpu.dot_dimension_numbers<[1], [0], [0], [1], [0, 0, 1, 1], [], []>} : vector<8x32xf32>, vector<32x64xf32>, vector<8x64xf32> -> vector<8x64xf32>
    %10 = vector.broadcast %8 : vector<1x64xf32> to vector<8x64xf32>
    %11 = arith.addf %9, %10 : vector<8x64xf32>
    %12 = math.tanh %11 : vector<8x64xf32>
    %c0_11 = arith.constant 0 : index
    %c0_12 = arith.constant 0 : index
    %13 = vector.load %arg7[%c0_11, %c0_12] : memref<64x32xf32, #tpu.memory_space<vmem>>, vector<64x32xf32>
    %cst_13 = arith.constant dense<0.000000e+00> : vector<8x32xf32>
    %14 = tpu.matmul %12, %13, %cst_13 {dimension_numbers = #tpu.dot_dimension_numbers<[1], [0], [0], [1], [0, 0, 1, 1], [], []>} : vector<8x64xf32>, vector<64x32xf32>, vector<8x32xf32> -> vector<8x32xf32>
    %c0_14 = arith.constant 0 : index
    %c0_15 = arith.constant 0 : index
    %15 = vector.load %arg9[%c0_14, %c0_15] : memref<1x32xf32, #tpu.memory_space<vmem>>, vector<1x32xf32>
    %16 = vector.broadcast %15 : vector<1x32xf32> to vector<8x32xf32>
    %17 = arith.addf %14, %16 : vector<8x32xf32>
    %c0_16 = arith.constant 0 : index
    %c0_17 = arith.constant 0 : index
    %18 = vector.load %arg10[%c0_16, %c0_17] : memref<8x32xf32, #tpu.memory_space<vmem>>, vector<8x32xf32>
    tpu.vector_store %arg10[%c0_16, %c0_17], %17 {strides = array<i32>} : memref<8x32xf32, #tpu.memory_space<vmem>>, vector<8x32xf32>,
    %cst_18 = arith.constant dense<0.000000e+00> : vector<8x64xf32>
    %19 = tpu.matmul %2, %3, %cst_18 {dimension_numbers = #tpu.dot_dimension_numbers<[1], [0], [0], [1], [0, 0, 1, 1], [], []>} : vector<8x32xf32>, vector<32x64xf32>, vector<8x64xf32> -> vector<8x64xf32>
    %c0_19 = arith.constant 0 : index
    %c0_20 = arith.constant 0 : index
    %20 = vector.load %arg8[%c0_19, %c0_20] : memref<32x64xf32, #tpu.memory_space<vmem>>, vector<32x64xf32>
    %cst_21 = arith.constant dense<0.000000e+00> : vector<8x64xf32>
    %21 = tpu.matmul %2, %20, %cst_21 {dimension_numbers = #tpu.dot_dimension_numbers<[1], [0], [0], [1], [0, 0, 1, 1], [], []>} : vector<8x32xf32>, vector<32x64xf32>, vector<8x64xf32> -> vector<8x64xf32>
    %22 = arith.mulf %12, %12 : vector<8x64xf32>
    %cst_22 = arith.constant 1.000000e+00 : f32
    %23 = vector.broadcast %cst_22 : f32 to vector<8x64xf32>
    %24 = arith.subf %23, %22 : vector<8x64xf32>
    %25 = arith.mulf %21, %24 : vector<8x64xf32>
    %26 = arith.mulf %25, %19 : vector<8x64xf32>
    %cst_23 = arith.constant dense<0.000000e+00> : vector<8xf32>
    %27 = vector.multi_reduction <add>, %26, %cst_23 [1] : vector<8x64xf32> to vector<8xf32>
    %28 = vector.shape_cast %27 : vector<8xf32> to vector<8x1xf32>
    %cst_24 = arith.constant 0.000000e+00 : f32
    %29 = vector.broadcast %cst_24 : f32 to vector<8x1xf32>
    %30 = arith.subf %29, %28 : vector<8x1xf32>
    %c0_25 = arith.constant 0 : index
    %c0_26 = arith.constant 0 : index
    %31 = vector.load %arg11[%c0_25, %c0_26] : memref<8x1xf32, #tpu.memory_space<vmem>>, vector<8x1xf32>
    tpu.vector_store %arg11[%c0_25, %c0_26], %30 {strides = array<i32>} : memref<8x1xf32, #tpu.memory_space<vmem>>, vector<8x1xf32>,
    return
  }
  func.func @transform_0(%arg0: i32) -> (i32, i32) {
    %c0_i32 = arith.constant 0 : i32
    %c0_i32_0 = arith.constant 0 : i32
    %c0_i32_1 = arith.constant 0 : i32
    return %c0_i32, %c0_i32_0 : i32, i32
  }
  func.func @transform_1(%arg0: i32) -> (i32, i32) {
    %c0_i32 = arith.constant 0 : i32
    %c0_i32_0 = arith.constant 0 : i32
    return %arg0, %c0_i32 : i32, i32
  }
  func.func @transform_2(%arg0: i32) -> (i32, i32) {
    %c0_i32 = arith.constant 0 : i32
    %c0_i32_0 = arith.constant 0 : i32
    return %arg0, %c0_i32 : i32, i32
  }
  func.func @transform_3(%arg0: i32) -> (i32, i32) {
    %c0_i32 = arith.constant 0 : i32
    %c0_i32_0 = arith.constant 0 : i32
    %c0_i32_1 = arith.constant 0 : i32
    return %c0_i32, %c0_i32_0 : i32, i32
  }
  func.func @transform_4(%arg0: i32) -> (i32, i32) {
    %c0_i32 = arith.constant 0 : i32
    %c0_i32_0 = arith.constant 0 : i32
    %c0_i32_1 = arith.constant 0 : i32
    return %c0_i32, %c0_i32_0 : i32, i32
  }
  func.func @transform_5(%arg0: i32) -> (i32, i32) {
    %c0_i32 = arith.constant 0 : i32
    %c0_i32_0 = arith.constant 0 : i32
    %c0_i32_1 = arith.constant 0 : i32
    return %c0_i32, %c0_i32_0 : i32, i32
  }
  func.func @transform_6(%arg0: i32) -> (i32, i32) {
    %c0_i32 = arith.constant 0 : i32
    %c0_i32_0 = arith.constant 0 : i32
    %c0_i32_1 = arith.constant 0 : i32
    return %c0_i32, %c0_i32_0 : i32, i32
  }
  func.func @transform_7(%arg0: i32) -> (i32, i32) {
    %c0_i32 = arith.constant 0 : i32
    %c0_i32_0 = arith.constant 0 : i32
    %c0_i32_1 = arith.constant 0 : i32
    return %c0_i32, %c0_i32_0 : i32, i32
  }
  func.func @transform_8(%arg0: i32) -> (i32, i32) {
    %c0_i32 = arith.constant 0 : i32
    %c0_i32_0 = arith.constant 0 : i32
    %c0_i32_1 = arith.constant 0 : i32
    return %c0_i32, %c0_i32_0 : i32, i32
  }
  func.func @transform_9(%arg0: i32) -> (i32, i32) {
    %c0_i32 = arith.constant 0 : i32
    %c0_i32_0 = arith.constant 0 : i32
    return %arg0, %c0_i32 : i32, i32
  }
  func.func @transform_10(%arg0: i32) -> (i32, i32) {
    %c0_i32 = arith.constant 0 : i32
    %c0_i32_0 = arith.constant 0 : i32
    return %arg0, %c0_i32 : i32, i32
  }
}

</mosaic_0001>

<llo_original>
// kernel: _cnf_forward.1
$region0: #{_cnf_forward.1}
  #allocation0 [shape = 'u32[]', space=smem, size = 0x4, offset = 0x4, fixed_abs, tag = 'smem constant byte address 0x4 - core index']
  #allocation1 [shape = 'u32[144,128]{1,0:T(1,128)}', space=vmem, size = 0x12000, scoped, tag = 'internal scratch']
  #allocation2 [shape = 'f32[1,1]{1,0:T(1,128)S(6)}', space=smem, size = 0x200, scoped, tag = 'scoped memory for _cnf_forward.1']
  %s0 = inlined_call_operand.<no memory space> [shape: f32[1,1], index: 0, kind: input, shape index: {}]
  %s1 = inlined_call_operand.vmem [shape: f32[8,32], index: 1, kind: input, shape index: {}]
  %s2 = inlined_call_operand.vmem [shape: f32[8,32], index: 2, kind: input, shape index: {}]
  %s3 = inlined_call_operand.vmem [shape: f32[32,64], index: 3, kind: input, shape index: {}]
  %s4 = inlined_call_operand.vmem [shape: f32[1,64], index: 4, kind: input, shape index: {}]
  %s5 = inlined_call_operand.vmem [shape: f32[1,64], index: 5, kind: input, shape index: {}]
  %s6 = inlined_call_operand.vmem [shape: f32[64,32], index: 6, kind: input, shape index: {}]
  %s7 = inlined_call_operand.vmem [shape: f32[32,64], index: 7, kind: input, shape index: {}]
  %s8 = inlined_call_operand.vmem [shape: f32[1,32], index: 8, kind: input, shape index: {}]
  %s9 = inlined_call_operand.hbm [shape: f32[8,32], index: 9, kind: output, shape index: {0}]
  %s10 = inlined_call_operand.vmem [shape: f32[8,1], index: 10, kind: output, shape index: {1}]
  %11 = xla_tuple %s9, %s10
  %s12 = sld [smem:[#allocation0]]
  $region54: #{_cnf_forward.1} parent=0
    _
  %s14 = ssub.s32 1, %s12
  %s15 = scalar_select 0, %s14, %s12
  %16 = sst [smem:[#allocation2]] %s0
  $region1: #{_cnf_forward.1} parent=0
    #allocation3 [shape = 'u8[4096]{0}', space=vmem, size = 0x1000, scoped, tag = 'output window, operand 0, single buffered']
    #allocation4 [shape = 's32[1]{0}', space=sflag, size = 0x4, scoped, tag = 'scoped memory for _cnf_forward.1']
    %17 = vsyncpa [#allocation4], 0
    // Predicated region
    $region2: #{_cnf_forward.1} parent=1 // pred_check
      _
    $region3: #{_cnf_forward.1} parent=1 // pred_check_branch
      %19 = sbr.rel (0) target = $region5
    $region4: #{_cnf_forward.1} parent=1 // pred_region
      _
    $region5: #{_cnf_forward.1} parent=1 // pred_fallthru
      _
    // Predicated region
    $region6: #{_cnf_forward.1} parent=1 // pred_check
      _
    $region7: #{_cnf_forward.1} parent=1 // pred_check_branch
      %21 = sbr.rel (0) target = $region9
    $region8: #{_cnf_forward.1} parent=1 // pred_region
      _
    $region9: #{_cnf_forward.1} parent=1 // pred_fallthru
      _
    // Predicated region
    $region10: #{_cnf_forward.1} parent=1 // pred_check
      _
    $region11: #{_cnf_forward.1} parent=1 // pred_check_branch
      %23 = sbr.rel (0) target = $region13
    $region12: #{_cnf_forward.1} parent=1 // pred_region
      _
    $region13: #{_cnf_forward.1} parent=1 // pred_fallthru
      _
    // Predicated region
    $region14: #{_cnf_forward.1} parent=1 // pred_check
      _
    $region15: #{_cnf_forward.1} parent=1 // pred_check_branch
      %25 = sbr.rel (0) target = $region17
    $region16: #{_cnf_forward.1} parent=1 // pred_region
      _
    $region17: #{_cnf_forward.1} parent=1 // pred_fallthru
      _
    // Predicated region
    $region18: #{_cnf_forward.1} parent=1 // pred_check
      _
    $region19: #{_cnf_forward.1} parent=1 // pred_check_branch
      %27 = sbr.rel (0) target = $region21
    $region20: #{_cnf_forward.1} parent=1 // pred_region
      _
    $region21: #{_cnf_forward.1} parent=1 // pred_fallthru
      _
    // Predicated region
    $region22: #{_cnf_forward.1} parent=1 // pred_check
      _
    $region23: #{_cnf_forward.1} parent=1 // pred_check_branch
      %29 = sbr.rel (0) target = $region25
    $region24: #{_cnf_forward.1} parent=1 // pred_region
      _
    $region25: #{_cnf_forward.1} parent=1 // pred_fallthru
      _
    // Predicated region
    $region26: #{_cnf_forward.1} parent=1 // pred_check
      _
    $region27: #{_cnf_forward.1} parent=1 // pred_check_branch
      %31 = sbr.rel (0) target = $region29
    $region28: #{_cnf_forward.1} parent=1 // pred_region
      _
    $region29: #{_cnf_forward.1} parent=1 // pred_fallthru
      _
    // Predicated region
    $region30: #{_cnf_forward.1} parent=1 // pred_check
      _
    $region31: #{_cnf_forward.1} parent=1 // pred_check_branch
      %33 = sbr.rel (0) target = $region33
    $region32: #{_cnf_forward.1} parent=1 // pred_region
      _
    $region33: #{_cnf_forward.1} parent=1 // pred_fallthru
      _
    // Predicated region
    $region34: #{_cnf_forward.1} parent=1 // pred_check
      _
    $region35: #{_cnf_forward.1} parent=1 // pred_check_branch
      %35 = sbr.rel (0) target = $region37
    $region36: #{_cnf_forward.1} parent=1 // pred_region
      _
    $region37: #{_cnf_forward.1} parent=1 // pred_fallthru
      _
    %s36 = sld [smem:[#allocation2]]
    %v37 = vld [vmem:[%s1] sm:$0xff]
    %v38 = vld [vmem:[%s2] sm:$0xff]
    %v39 = vld [vmem:[%s3] sm:$0xff]
    %v40 = vld [vmem:[%s3 + $0x8] sm:$0xff]
    %v41 = vld [vmem:[%s3 + $0x10] sm:$0xff]
    %v42 = vld [vmem:[%s3 + $0x18] sm:$0xff]
    %v43 = vld [vmem:[%s4] sm:$0x1]
    %v44 = vld [vmem:[%s5] sm:$0x1]
    %v45 = vstv %s36
    %v46 = vmul.f32 %v45, %v44
    %v47 = vadd.f32 %v43, %v46
    %v49 = vlaneseq
    %v50 = vshrl.u32 %v49, 7
    %v51 = vsub.s32 0, %v50
    %v52 = vrot.slane %v47, %v51
    %vm54 = vcmask 261120
    %v56 = vsel %vm54, %v37, 0
    %58 = vmatprep.subr.mxu0 0.0
    %59 = vmatpush1.msra.mxu0 %v39
    %60 = vmatprep.subr.mxu0 0.0
    %61 = vmatpush1.msra.mxu0 %v40
    %62 = vmatprep.subr.mxu0 0.0
    %63 = vmatpush1.msra.mxu0 %v41
    %64 = vmatprep.subr.mxu0 0.0
    %65 = vmatpush1.msra.mxu0 %v42
    %66 = vmatprep.subr.mxu0 0.0
    %67 = vmatpush1.msra.mxu0 0.0
    %68 = vmatprep.subr.mxu0 0.0
    %69 = vmatpush1.msra.mxu0 0.0
    %70 = vmatprep.subr.mxu0 0.0
    %71 = vmatpush1.msra.mxu0 0.0
    %72 = vmatprep.subr.mxu0 0.0
    %73 = vmatpush1.msra.mxu0 0.0
    %74 = vmatprep.subr.mxu0 0.0
    %75 = vmatpush1.msra.mxu0 0.0
    %76 = vmatprep.subr.mxu0 0.0
    %77 = vmatpush1.msra.mxu0 0.0
    %78 = vmatprep.subr.mxu0 0.0
    %79 = vmatpush1.msra.mxu0 0.0
    %80 = vmatprep.subr.mxu0 0.0
    %81 = vmatpush1.msra.mxu0 0.0
    %82 = vmatprep.subr.mxu0 0.0
    %83 = vmatpush1.msra.mxu0 0.0
    %84 = vmatprep.subr.mxu0 0.0
    %85 = vmatpush1.msra.mxu0 0.0
    %86 = vmatprep.subr.mxu0 0.0
    %87 = vmatpush1.msra.mxu0 0.0
    %88 = vmatprep.subr.mxu0 0.0
    %89 = vmatpush1.msra.mxu0 0.0
    %90 = vmatprep.subr.mxu0 0.0
    %91 = vmatpush1.msra.mxu0 0.0
    %92 = vmatprep.subr.mxu0 0.0
    %93 = vmatpush1.msra.mxu0 0.0
    %94 = vmatprep.subr.mxu0 0.0
    %95 = vmatpush1.msra.mxu0 0.0
    %96 = vmatprep.subr.mxu0 0.0
    %97 = vmatpush1.msra.mxu0 0.0
    %98 = vmatprep.subr.mxu0 0.0
    %99 = vmatpush1.msra.mxu0 0.0
    %100 = vmatprep.subr.mxu0 0.0
    %101 = vmatpush1.msra.mxu0 0.0
    %102 = vmatprep.subr.mxu0 0.0
    %103 = vmatpush1.msra.mxu0 0.0
    %104 = vmatprep.subr.mxu0 0.0
    %105 = vmatpush1.msra.mxu0 0.0
    %106 = vmatprep.subr.mxu0 0.0
    %107 = vmatpush1.msra.mxu0 0.0
    %108 = vmatprep.subr.mxu0 0.0
    %109 = vmatpush1.msra.mxu0 0.0
    %110 = vmatprep.subr.mxu0 0.0
    %111 = vmatpush1.msra.mxu0 0.0
    %112 = vmatprep.subr.mxu0 0.0
    %113 = vmatpush1.msra.mxu0 0.0
    %114 = vmatprep.subr.mxu0 0.0
    %115 = vmatpush1.msra.mxu0 0.0
    %116 = vmatprep.subr.mxu0 0.0
    %117 = vmatpush1.msra.mxu0 0.0
    %118 = vmatprep.subr.mxu0 0.0
    %119 = vmatpush1.msra.mxu0 0.0
    %120 = vmatprep.subr.mxu0 0.0
    %121 = vmatpush1.msra.mxu0 0.0
    %122 = vmatprep.mubr.f32.mxu0 0.0
    %123 = vmatmul.mubr.f32.gmra.mrb[0].mxu0 %v56
    %v124 = vpop.f32.mrb[0].mxu0
    %v125 = vadd.f32 %v52, %v124
    %v126 = vpop.f32.mrb[0].mxu0
    %127 = vdwg.mxu0
    %v128 = vtanh.pop %v125
    %v129 = vld [vmem:[%s6] sm:$0xff]
    %v130 = vld [vmem:[%s6 + $0x8] sm:$0xff]
    %v131 = vld [vmem:[%s6 + $0x10] sm:$0xff]
    %v132 = vld [vmem:[%s6 + $0x18] sm:$0xff]
    %v133 = vld [vmem:[%s6 + $0x20] sm:$0xff]
    %v134 = vld [vmem:[%s6 + $0x28] sm:$0xff]
    %v135 = vld [vmem:[%s6 + $0x30] sm:$0xff]
    %v136 = vld [vmem:[%s6 + $0x38] sm:$0xff]
    %v137 = vld [vmem:[%s8] sm:$0x1]
    %v139 = vlaneseq
    %v140 = vshrl.u32 %v139, 7
    %v141 = vsub.s32 0, %v140
    %v142 = vrot.slane %v137, %v141
    %vm144 = vcmask 523264
    %v146 = vsel %vm144, %v128, 0
    %148 = vmatprep.subr.mxu0 0.0
    %149 = vmatpush1.msra.mxu0 %v129
    %150 = vmatprep.subr.mxu0 0.0
    %151 = vmatpush1.msra.mxu0 %v130
    %152 = vmatprep.subr.mxu0 0.0
    %153 = vmatpush1.msra.mxu0 %v131
    %154 = vmatprep.subr.mxu0 0.0
    %155 = vmatpush1.msra.mxu0 %v132
    %156 = vmatprep.subr.mxu0 0.0
    %157 = vmatpush1.msra.mxu0 %v133
    %158 = vmatprep.subr.mxu0 0.0
    %159 = vmatpush1.msra.mxu0 %v134
    %160 = vmatprep.subr.mxu0 0.0
    %161 = vmatpush1.msra.mxu0 %v135
    %162 = vmatprep.subr.mxu0 0.0
    %163 = vmatpush1.msra.mxu0 %v136
    %164 = vmatprep.subr.mxu0 0.0
    %165 = vmatpush1.msra.mxu0 0.0
    %166 = vmatprep.subr.mxu0 0.0
    %167 = vmatpush1.msra.mxu0 0.0
    %168 = vmatprep.subr.mxu0 0.0
    %169 = vmatpush1.msra.mxu0 0.0
    %170 = vmatprep.subr.mxu0 0.0
    %171 = vmatpush1.msra.mxu0 0.0
    %172 = vmatprep.subr.mxu0 0.0
    %173 = vmatpush1.msra.mxu0 0.0
    %174 = vmatprep.subr.mxu0 0.0
    %175 = vmatpush1.msra.mxu0 0.0
    %176 = vmatprep.subr.mxu0 0.0
    %177 = vmatpush1.msra.mxu0 0.0
    %178 = vmatprep.subr.mxu0 0.0
    %179 = vmatpush1.msra.mxu0 0.0
    %180 = vmatprep.subr.mxu0 0.0
    %181 = vmatpush1.msra.mxu0 0.0
    %182 = vmatprep.subr.mxu0 0.0
    %183 = vmatpush1.msra.mxu0 0.0
    %184 = vmatprep.subr.mxu0 0.0
    %185 = vmatpush1.msra.mxu0 0.0
    %186 = vmatprep.subr.mxu0 0.0
    %187 = vmatpush1.msra.mxu0 0.0
    %188 = vmatprep.subr.mxu0 0.0
    %189 = vmatpush1.msra.mxu0 0.0
    %190 = vmatprep.subr.mxu0 0.0
    %191 = vmatpush1.msra.mxu0 0.0
    %192 = vmatprep.subr.mxu0 0.0
    %193 = vmatpush1.msra.mxu0 0.0
    %194 = vmatprep.subr.mxu0 0.0
    %195 = vmatpush1.msra.mxu0 0.0
    %196 = vmatprep.subr.mxu0 0.0
    %197 = vmatpush1.msra.mxu0 0.0
    %198 = vmatprep.subr.mxu0 0.0
    %199 = vmatpush1.msra.mxu0 0.0
    %200 = vmatprep.subr.mxu0 0.0
    %201 = vmatpush1.msra.mxu0 0.0
    %202 = vmatprep.subr.mxu0 0.0
    %203 = vmatpush1.msra.mxu0 0.0
    %204 = vmatprep.subr.mxu0 0.0
    %205 = vmatpush1.msra.mxu0 0.0
    %206 = vmatprep.subr.mxu0 0.0
    %207 = vmatpush1.msra.mxu0 0.0
    %208 = vmatprep.subr.mxu0 0.0
    %209 = vmatpush1.msra.mxu0 0.0
    %210 = vmatprep.subr.mxu0 0.0
    %211 = vmatpush1.msra.mxu0 0.0
    %212 = vmatprep.mubr.f32.mxu0 0.0
    %213 = vmatmul.mubr.f32.gmra.mrb[0].mxu0 %v146
    %v214 = vpop.f32.mrb[0].mxu0
    %v215 = vadd.f32 %v142, %v214
    %v216 = vpop.f32.mrb[0].mxu0
    %217 = vdwg.mxu0
    %218 = vst.msk [vmem:[#allocation3] sm:$0xff] %vm54, %v215
    %v220 = vsel %vm54, %v38, 0
    %222 = vmatprep.subr.mxu0 0.0
    %223 = vmatpush1.msra.mxu0 %v39
    %224 = vmatprep.subr.mxu0 0.0
    %225 = vmatpush1.msra.mxu0 %v40
    %226 = vmatprep.subr.mxu0 0.0
    %227 = vmatpush1.msra.mxu0 %v41
    %228 = vmatprep.subr.mxu0 0.0
    %229 = vmatpush1.msra.mxu0 %v42
    %230 = vmatprep.subr.mxu0 0.0
    %231 = vmatpush1.msra.mxu0 0.0
    %232 = vmatprep.subr.mxu0 0.0
    %233 = vmatpush1.msra.mxu0 0.0
    %234 = vmatprep.subr.mxu0 0.0
    %235 = vmatpush1.msra.mxu0 0.0
    %236 = vmatprep.subr.mxu0 0.0
    %237 = vmatpush1.msra.mxu0 0.0
    %238 = vmatprep.subr.mxu0 0.0
    %239 = vmatpush1.msra.mxu0 0.0
    %240 = vmatprep.subr.mxu0 0.0
    %241 = vmatpush1.msra.mxu0 0.0
    %242 = vmatprep.subr.mxu0 0.0
    %243 = vmatpush1.msra.mxu0 0.0
    %244 = vmatprep.subr.mxu0 0.0
    %245 = vmatpush1.msra.mxu0 0.0
    %246 = vmatprep.subr.mxu0 0.0
    %247 = vmatpush1.msra.mxu0 0.0
    %248 = vmatprep.subr.mxu0 0.0
    %249 = vmatpush1.msra.mxu0 0.0
    %250 = vmatprep.subr.mxu0 0.0
    %251 = vmatpush1.msra.mxu0 0.0
    %252 = vmatprep.subr.mxu0 0.0
    %253 = vmatpush1.msra.mxu0 0.0
    %254 = vmatprep.subr.mxu0 0.0
    %255 = vmatpush1.msra.mxu0 0.0
    %256 = vmatprep.subr.mxu0 0.0
    %257 = vmatpush1.msra.mxu0 0.0
    %258 = vmatprep.subr.mxu0 0.0
    %259 = vmatpush1.msra.mxu0 0.0
    %260 = vmatprep.subr.mxu0 0.0
    %261 = vmatpush1.msra.mxu0 0.0
    %262 = vmatprep.subr.mxu0 0.0
    %263 = vmatpush1.msra.mxu0 0.0
    %264 = vmatprep.subr.mxu0 0.0
    %265 = vmatpush1.msra.mxu0 0.0
    %266 = vmatprep.subr.mxu0 0.0
    %267 = vmatpush1.msra.mxu0 0.0
    %268 = vmatprep.subr.mxu0 0.0
    %269 = vmatpush1.msra.mxu0 0.0
    %270 = vmatprep.subr.mxu0 0.0
    %271 = vmatpush1.msra.mxu0 0.0
    %272 = vmatprep.subr.mxu0 0.0
    %273 = vmatpush1.msra.mxu0 0.0
    %274 = vmatprep.subr.mxu0 0.0
    %275 = vmatpush1.msra.mxu0 0.0
    %276 = vmatprep.subr.mxu0 0.0
    %277 = vmatpush1.msra.mxu0 0.0
    %278 = vmatprep.subr.mxu0 0.0
    %279 = vmatpush1.msra.mxu0 0.0
    %280 = vmatprep.subr.mxu0 0.0
    %281 = vmatpush1.msra.mxu0 0.0
    %282 = vmatprep.subr.mxu0 0.0
    %283 = vmatpush1.msra.mxu0 0.0
    %284 = vmatprep.subr.mxu0 0.0
    %285 = vmatpush1.msra.mxu0 0.0
    %286 = vmatprep.mubr.f32.mxu0 0.0
    %287 = vmatmul.mubr.f32.gmra.mrb[0].mxu0 %v220
    %v288 = vpop.f32.mrb[0].mxu0
    %v289 = vadd.f32 0.0, %v288
    %v290 = vpop.f32.mrb[0].mxu0
    %291 = vdwg.mxu0
    %v292 = vld [vmem:[%s7] sm:$0xff]
    %v293 = vld [vmem:[%s7 + $0x8] sm:$0xff]
    %v294 = vld [vmem:[%s7 + $0x10] sm:$0xff]
    %v295 = vld [vmem:[%s7 + $0x18] sm:$0xff]
    %296 = vmatprep.subr.mxu0 0.0
    %297 = vmatpush1.msra.mxu0 %v292
    %298 = vmatprep.subr.mxu0 0.0
    %299 = vmatpush1.msra.mxu0 %v293
    %300 = vmatprep.subr.mxu0 0.0
    %301 = vmatpush1.msra.mxu0 %v294
    %302 = vmatprep.subr.mxu0 0.0
    %303 = vmatpush1.msra.mxu0 %v295
    %304 = vmatprep.subr.mxu0 0.0
    %305 = vmatpush1.msra.mxu0 0.0
    %306 = vmatprep.subr.mxu0 0.0
    %307 = vmatpush1.msra.mxu0 0.0
    %308 = vmatprep.subr.mxu0 0.0
    %309 = vmatpush1.msra.mxu0 0.0
    %310 = vmatprep.subr.mxu0 0.0
    %311 = vmatpush1.msra.mxu0 0.0
    %312 = vmatprep.subr.mxu0 0.0
    %313 = vmatpush1.msra.mxu0 0.0
    %314 = vmatprep.subr.mxu0 0.0
    %315 = vmatpush1.msra.mxu0 0.0
    %316 = vmatprep.subr.mxu0 0.0
    %317 = vmatpush1.msra.mxu0 0.0
    %318 = vmatprep.subr.mxu0 0.0
    %319 = vmatpush1.msra.mxu0 0.0
    %320 = vmatprep.subr.mxu0 0.0
    %321 = vmatpush1.msra.mxu0 0.0
    %322 = vmatprep.subr.mxu0 0.0
    %323 = vmatpush1.msra.mxu0 0.0
    %324 = vmatprep.subr.mxu0 0.0
    %325 = vmatpush1.msra.mxu0 0.0
    %326 = vmatprep.subr.mxu0 0.0
    %327 = vmatpush1.msra.mxu0 0.0
    %328 = vmatprep.subr.mxu0 0.0
    %329 = vmatpush1.msra.mxu0 0.0
    %330 = vmatprep.subr.mxu0 0.0
    %331 = vmatpush1.msra.mxu0 0.0
    %332 = vmatprep.subr.mxu0 0.0
    %333 = vmatpush1.msra.mxu0 0.0
    %334 = vmatprep.subr.mxu0 0.0
    %335 = vmatpush1.msra.mxu0 0.0
    %336 = vmatprep.subr.mxu0 0.0
    %337 = vmatpush1.msra.mxu0 0.0
    %338 = vmatprep.subr.mxu0 0.0
    %339 = vmatpush1.msra.mxu0 0.0
    %340 = vmatprep.subr.mxu0 0.0
    %341 = vmatpush1.msra.mxu0 0.0
    %342 = vmatprep.subr.mxu0 0.0
    %343 = vmatpush1.msra.mxu0 0.0
    %344 = vmatprep.subr.mxu0 0.0
    %345 = vmatpush1.msra.mxu0 0.0
    %346 = vmatprep.subr.mxu0 0.0
    %347 = vmatpush1.msra.mxu0 0.0
    %348 = vmatprep.subr.mxu0 0.0
    %349 = vmatpush1.msra.mxu0 0.0
    %350 = vmatprep.subr.mxu0 0.0
    %351 = vmatpush1.msra.mxu0 0.0
    %352 = vmatprep.subr.mxu0 0.0
    %353 = vmatpush1.msra.mxu0 0.0
    %354 = vmatprep.subr.mxu0 0.0
    %355 = vmatpush1.msra.mxu0 0.0
    %356 = vmatprep.subr.mxu0 0.0
    %357 = vmatpush1.msra.mxu0 0.0
    %358 = vmatprep.subr.mxu0 0.0
    %359 = vmatpush1.msra.mxu0 0.0
    %360 = vmatprep.mubr.f32.mxu0 0.0
    %361 = vmatmul.mubr.f32.gmra.mrb[0].mxu0 %v220
    %v362 = vpop.f32.mrb[0].mxu0
    %v363 = vadd.f32 0.0, %v362
    %v364 = vpop.f32.mrb[0].mxu0
    %365 = vdwg.mxu0
    %v366 = vmul.f32 %v128, %v128
    %v367 = vsub.f32 1.0, %v366
    %v368 = vmul.f32 %v363, %v367
    %v369 = vmul.f32 %v368, %v289
    %v370 = vsel %vm144, %v369, 0.0
    %371 = vadd.xlane.f32.xlu0 %v370
    %v372 = vpop.xlane.xlu0 %371
    %v373 = vsub.f32 0.0, %v372
    %vm374 = vcmask 7168
    %375 = vst.msk [vmem:[%s10] sm:$0xff] %vm374, %v373
    // Predicated region
    $region38: #{_cnf_forward.1} parent=1 // pred_check
      _
    $region39: #{_cnf_forward.1} parent=1 // pred_check_branch
      %377 = sbr.rel (0) target = $region41
    $region40: #{_cnf_forward.1} parent=1 // pred_region
      %s379 = ssub.s32 128, 128
      %380 = vsyncadd [#allocation4], %s379
      %s382 = sshll.u32 [#allocation3], 4
      %s383 = int_to_ptr.vmem [resolvable:$true] %s382
      %385 = dma.vmem_to_hbm [thread:$0]  %s383, 128, %s9, [#allocation4]
    $region41: #{_cnf_forward.1} parent=1 // pred_fallthru
      _
    // Predicated region
    $region42: #{_cnf_forward.1} parent=1 // pred_check
      _
    $region43: #{_cnf_forward.1} parent=1 // pred_check_branch
      %387 = sbr.rel (0) target = $region45
    $region44: #{_cnf_forward.1} parent=1 // pred_region
      _
    $region45: #{_cnf_forward.1} parent=1 // pred_fallthru
      _
    // Predicated region
    $region46: #{_cnf_forward.1} parent=1 // pred_check
      _
    $region47: #{_cnf_forward.1} parent=1 // pred_check_branch
      %389 = sbr.rel (0) target = $region49
    $region48: #{_cnf_forward.1} parent=1 // pred_region
      %390 = dma.done [#allocation4], 128
    $region49: #{_cnf_forward.1} parent=1 // pred_fallthru
      _
    // Predicated region
    $region50: #{_cnf_forward.1} parent=1 // pred_check
      _
    $region51: #{_cnf_forward.1} parent=1 // pred_check_branch
      %392 = sbr.rel (0) target = $region53
    $region52: #{_cnf_forward.1} parent=1 // pred_region
      _
    $region53: #{_cnf_forward.1} parent=1 // pred_fallthru
      _
    %393 = vsyncpa [#allocation4], 1

</llo_original>
